<compile_context>
chip_gen: v5e
topology: v5e:2x2
jax: 0.10.0
libtpu: 0.0.40
codegen_flags: <defaults>
</compile_context>

<pallas_src>
import functools
import math

import jax
import jax.numpy as jnp
from jax.experimental import pallas as pl
from jax.experimental.pallas import tpu as pltpu


def _chpaf_kernel(x_ref, a_ref, o_ref, *, poly_order_count: int):
    """Chebyshev polynomial activation on one (tm, td) tile via Clenshaw recurrence.

    x_ref: (tm, td) input tile
    a_ref: (P, td)  per-channel coefficients for this D-tile (resident across M-tiles)
    o_ref: (tm, td) output tile
    """
    P = poly_order_count
    x = x_ref[...].astype(jnp.float32)                       # (tm, td)
    # Coefficient rows kept as (1, td) — broadcast lazily against full tiles.
    a = [a_ref[i:i + 1, :].astype(jnp.float32) for i in range(P)]

    if P == 1:
        o_ref[...] = jnp.broadcast_to(a[0], x.shape).astype(o_ref.dtype)
        return
    if P == 2:
        o_ref[...] = (a[0] + a[1] * x).astype(o_ref.dtype)
        return

    # Clenshaw: b_P = b_{P+1} = 0; b_k = a_k + 2x*b_{k+1} - b_{k+2}; y = a_0 + x*b_1 - b_2.
    two_x = x + x                                            # hoisted out of the loop
    b_kp1 = a[P - 1]                                         # b_{P-1}: stays a (1, td) row
    b_kp2 = None                                             # b_P == 0
    for k in range(P - 2, 0, -1):                            # static unroll, P small
        if b_kp2 is None:
            b_k = a[k] + two_x * b_kp1
        else:
            b_k = a[k] + two_x * b_kp1 - b_kp2
        b_kp2, b_kp1 = b_kp1, b_k

    y = a[0] + x * b_kp1 - b_kp2
    o_ref[...] = y.astype(o_ref.dtype)


def _round_up(v: int, m: int) -> int:
    return ((v + m - 1) // m) * m


def _pick_tile_d(d_fold: int, tile_d_max: int) -> int:
    """Largest multiple of 128 that divides d_fold and is <= tile_d_max."""
    q = d_fold // 128
    best = 128
    for div in range(1, q + 1):
        if q % div == 0 and 128 * div <= tile_d_max:
            best = 128 * div
    return best


def _vmem_capacity_bytes() -> int:
    """Per-core VMEM capacity; conservative fallback (v7x = 64 MiB) if query fails."""
    try:
        return int(pltpu.get_tpu_info().vmem_capacity_bytes)
    except Exception:
        return 64 * 1024 * 1024


def chpaf_pallas(x: jax.Array, a: jax.Array, *, tile_d_max: int = 2048) -> jax.Array:
    """Apply ChPAF.  x: (..., D), a: (P, D)."""
    P, D = a.shape
    orig_shape = x.shape
    assert orig_shape[-1] == D, "last dim of x must equal dim_sz"

    x2 = x.reshape(-1, D)                                    # (M, D), free reshape
    M = x2.shape[0]

    # ---- Lane-dense fold of the channel axis ------------------------------------
    k = 128 // math.gcd(D, 128)
    d_fold = k * D                                           # multiple of 128
    # Pad M only to a multiple of k (needed for the fold reshape). At most k-1 rows,
    # and only when D is not already a multiple of 128.
    m_k = _round_up(max(M, 1), k)
    if m_k != M:
        x2 = jnp.pad(x2, ((0, m_k - M), (0, 0)))
    m_fold = m_k // k
    x_fold = x2.reshape(m_fold, d_fold)
    # Coefficients tiled along the folded lane axis: a_fold[p, j] == a[p, j % D].
    a_fold = jnp.tile(a, (1, k)) if k > 1 else a

    # ---- D tile: multiple of 128 that divides d_fold (lane axis stays dense) -----
    tile_d = _pick_tile_d(d_fold, max(128, tile_d_max))
    d_tiles = d_fold // tile_d

    # ---- M tile: byte-based, dtype-aware VMEM budget ------------------------------
    itemsize = jnp.dtype(x.dtype).itemsize
    vmem_cap = _vmem_capacity_bytes()                        # 128 MiB v5e/v6e, 64 MiB v7x
    vmem_budget = int(vmem_cap * 0.60)                       # buffers + temps
    vmem_limit = int(vmem_cap * 0.80)                        # scoped limit, keep headroom
    # Per tile row: double-buffered input + output (itemsize each) plus ~6 live f32
    # full-tile temporaries inside the Clenshaw chain.
    bytes_per_row = tile_d * (4 * itemsize + 6 * 4)
    tile_m_cap = max(8, (vmem_budget // bytes_per_row) // 8 * 8)

    if m_fold <= tile_m_cap:
        tile_m = m_fold                                      # single block == full dim (ok)
    else:
        tile_m = tile_m_cap                                  # multiple of 8; last block may be partial
    m_tiles = pl.cdiv(m_fold, tile_m)

    # v7x megacore: if everything landed in one block but there is real work, split M so
    # both TensorCores get a block (no-op on single-TC v5e/v6e).
    if m_tiles == 1 and d_tiles == 1 and m_fold >= 16 and m_fold * d_fold >= (1 << 20):
        tile_m = max(8, _round_up(-(-m_fold // 2), 8))
        m_tiles = pl.cdiv(m_fold, tile_m)

    # ---- Grid: D outer, M inner -> coefficient block resident across inner loop ---
    if d_tiles > 1:
        grid = (d_tiles, m_tiles)
        x_map = lambda j, i: (i, j)
        a_map = lambda j, i: (0, j)
    else:
        grid = (m_tiles, d_tiles)                            # (m_tiles, 1)
        x_map = lambda i, j: (i, j)
        a_map = lambda i, j: (0, j)                          # j == 0 always -> resident

    kernel = functools.partial(_chpaf_kernel, poly_order_count=P)

    out = pl.pallas_call(
        kernel,
        out_shape=jax.ShapeDtypeStruct((m_fold, d_fold), x.dtype),
        grid_spec=pltpu.PrefetchScalarGridSpec(
            num_scalar_prefetch=0,
            grid=grid,
            in_specs=[
                pl.BlockSpec((tile_m, tile_d), x_map),       # x tile
                pl.BlockSpec((P, tile_d), a_map),            # coeffs (constant across inner axis)
            ],
            out_specs=pl.BlockSpec((tile_m, tile_d), x_map),
        ),
        compiler_params=pltpu.CompilerParams(
            dimension_semantics=("parallel", "parallel"),
            vmem_limit_bytes=vmem_limit,
        ),
    )(x_fold, a_fold)

    out = out.reshape(m_k, D)                                # free reshape
    if m_k != M:
        out = out[:M]                                        # only on the (rare) fold-pad path
    return out.reshape(orig_shape)


def chpaf_reference(x: jax.Array, a: jax.Array) -> jax.Array:
    """Pure-JAX reference mirroring the PyTorch module (iterative Chebyshev recurrence)."""
    P = a.shape[0]
    acc = a[0] * jnp.ones_like(x)
    if P > 1:
        t_prev = jnp.ones_like(x)
        t_cur = x
        acc = acc + a[1] * t_cur
        for i in range(2, P):
            t_next = 2.0 * x * t_cur - t_prev
            acc = acc + a[i] * t_next
            t_prev, t_cur = t_cur, t_next
    return acc


if __name__ == "__main__":
    key = jax.random.PRNGKey(0)
    k1, k2, k3, k4, k5 = jax.random.split(key, 5)

    # Case 1: (batch, seq, hidden) with D < 128 -> lane-dense fold path, no pad (M % k == 0).
    B, S, D = 2, 8, 32
    P1 = 3
    x1 = jax.random.normal(k1, (B, S, D), dtype=jnp.float32)
    a1 = 1.0 + 0.1 * jax.random.normal(k2, (P1, D), dtype=jnp.float32)
    y1 = jax.block_until_ready(chpaf_pallas(x1, a1))
    y1_ref = chpaf_reference(x1, a1)
    assert y1.shape == x1.shape
    assert jnp.allclose(y1, y1_ref, atol=1e-4, rtol=1e-5), "mismatch vs reference (case 1)"

    # Case 2: ragged M w.r.t. the fold factor, higher order -> exercises small fold-pad + Clenshaw.
    B2, S2, D2 = 3, 5, 48
    P2 = 4
    x2 = jax.random.normal(k3, (B2, S2, D2), dtype=jnp.float32)
    a2 = 1.0 + 0.1 * jax.random.normal(k4, (P2, D2), dtype=jnp.float32)
    y2 = jax.block_until_ready(chpaf_pallas(x2, a2))
    y2_ref = chpaf_reference(x2, a2)
    assert y2.shape == x2.shape
    assert jnp.allclose(y2, y2_ref, atol=1e-4, rtol=1e-5), "mismatch vs reference (case 2)"

    # Case 3: D already a multiple of 128 (no fold, no pad), P == 2 branch.
    B3, S3, D3 = 2, 8, 256
    P3 = 2
    x3 = jax.random.normal(k5, (B3, S3, D3), dtype=jnp.float32)
    a3 = jnp.ones((P3, D3), dtype=jnp.float32)
    y3 = jax.block_until_ready(chpaf_pallas(x3, a3))
    y3_ref = chpaf_reference(x3, a3)
    assert y3.shape == x3.shape
    assert jnp.allclose(y3, y3_ref, atol=1e-4, rtol=1e-5), "mismatch vs reference (case 3)"

    print("KERNEL_OK")
</pallas_src>

<mosaic_0001>
module attributes {stable_mosaic.version = 11 : i64} {
  func.func @_chpaf_kernel(%arg0: i32, %arg1: i32, %arg2: memref<4x128xf32, #tpu.memory_space<vmem>>, %arg3: memref<3x128xf32, #tpu.memory_space<vmem>>, %arg4: memref<4x128xf32, #tpu.memory_space<vmem>>) attributes {dimension_semantics = [#tpu.dimension_semantics<parallel>, #tpu.dimension_semantics<parallel>], iteration_bounds = array<i64: 1, 1>, scalar_prefetch = 0 : i64, scratch_operands = 0 : i64, tpu.core_type = #tpu.core_type<tc>, window_params = [{transform_indices = @transform_0, window_bounds = array<i64: 4, 128>}, {transform_indices = @transform_1, window_bounds = array<i64: 3, 128>}, {transform_indices = @transform_2, window_bounds = array<i64: 4, 128>}]} {
    %c0 = arith.constant 0 : index
    %c0_0 = arith.constant 0 : index
    %0 = vector.load %arg2[%c0, %c0_0] : memref<4x128xf32, #tpu.memory_space<vmem>>, vector<4x128xf32>
    %c0_1 = arith.constant 0 : index
    %c0_2 = arith.constant 0 : index
    %1 = vector.load %arg3[%c0_1, %c0_2] : memref<3x128xf32, #tpu.memory_space<vmem>>, vector<1x128xf32>
    %c1 = arith.constant 1 : index
    %c0_3 = arith.constant 0 : index
    %2 = vector.load %arg3[%c1, %c0_3] : memref<3x128xf32, #tpu.memory_space<vmem>>, vector<1x128xf32>
    %c2 = arith.constant 2 : index
    %c0_4 = arith.constant 0 : index
    %3 = vector.load %arg3[%c2, %c0_4] : memref<3x128xf32, #tpu.memory_space<vmem>>, vector<1x128xf32>
    %4 = arith.addf %0, %0 : vector<4x128xf32>
    %5 = vector.broadcast %3 : vector<1x128xf32> to vector<4x128xf32>
    %6 = arith.mulf %4, %5 : vector<4x128xf32>
    %7 = vector.broadcast %2 : vector<1x128xf32> to vector<4x128xf32>
    %8 = arith.addf %7, %6 : vector<4x128xf32>
    %9 = arith.mulf %0, %8 : vector<4x128xf32>
    %10 = vector.broadcast %1 : vector<1x128xf32> to vector<4x128xf32>
    %11 = arith.addf %10, %9 : vector<4x128xf32>
    %12 = vector.broadcast %3 : vector<1x128xf32> to vector<4x128xf32>
    %13 = arith.subf %11, %12 : vector<4x128xf32>
    %c0_5 = arith.constant 0 : index
    %c0_6 = arith.constant 0 : index
    %14 = vector.load %arg4[%c0_5, %c0_6] : memref<4x128xf32, #tpu.memory_space<vmem>>, vector<4x128xf32>
    tpu.vector_store %arg4[%c0_5, %c0_6], %13 {strides = array<i32>} : memref<4x128xf32, #tpu.memory_space<vmem>>, vector<4x128xf32>,
    return
  }
  func.func @transform_0(%arg0: i32, %arg1: i32) -> (i32, i32) {
    %c0_i32 = arith.constant 0 : i32
    return %arg0, %arg1 : i32, i32
  }
  func.func @transform_1(%arg0: i32, %arg1: i32) -> (i32, i32) {
    %c0_i32 = arith.constant 0 : i32
    %c0_i32_0 = arith.constant 0 : i32
    return %c0_i32, %arg1 : i32, i32
  }
  func.func @transform_2(%arg0: i32, %arg1: i32) -> (i32, i32) {
    %c0_i32 = arith.constant 0 : i32
    return %arg0, %arg1 : i32, i32
  }
}

</mosaic_0001>

<llo_original>
// kernel: tpu_custom_call.1
$region0: #{tpu_custom_call.1}
  #allocation0 [shape = 'u32[]', space=smem, size = 0x4, offset = 0x4, fixed_abs, tag = 'smem constant byte address 0x4 - core index']
  #allocation1 [shape = 'u32[72,128]{1,0:T(1,128)}', space=vmem, size = 0x9000, scoped, tag = 'internal scratch']
  %s0 = inlined_call_operand.hbm [shape: f32[4,128], index: 0, kind: input, shape index: {}]
  %s1 = inlined_call_operand.hbm [shape: f32[3,128], index: 1, kind: input, shape index: {}]
  %s2 = inlined_call_operand.hbm [shape: f32[4,128], index: 2, kind: output, shape index: {}]
  %s3 = sld [smem:[#allocation0]]
  $region26: #{tpu_custom_call.1} parent=0
    _
  %s5 = ssub.s32 1, %s3
  %s6 = scalar_select 0, %s5, %s3
  $region1: #{tpu_custom_call.1} parent=0
    #allocation2 [shape = 'u8[2048]{0}', space=vmem, size = 0x800, scoped, tag = 'input window, operand 0, single buffered']
    #allocation3 [shape = 's32[1]{0}', space=sflag, size = 0x4, scoped, tag = 'scoped memory for tpu_custom_call.1']
    #allocation4 [shape = 's32[1]{0}', space=sflag, size = 0x4, scoped, tag = 'scoped memory for tpu_custom_call.1']
    #allocation5 [shape = 'u8[2048]{0}', space=vmem, size = 0x800, scoped, tag = 'input window, operand 1, single buffered']
    #allocation6 [shape = 's32[1]{0}', space=sflag, size = 0x4, scoped, tag = 'scoped memory for tpu_custom_call.1']
    #allocation7 [shape = 'u8[2048]{0}', space=vmem, size = 0x800, scoped, tag = 'output window, operand 0, single buffered']
    %7 = vsyncpa [#allocation3], 0
    %8 = vsyncpa [#allocation6], 0
    %9 = vsyncpa [#allocation4], 0
    // Predicated region
    $region2: #{tpu_custom_call.1} parent=1 // pred_check
      _
    $region3: #{tpu_custom_call.1} parent=1 // pred_check_branch
      %11 = sbr.rel (0) target = $region5
    $region4: #{tpu_custom_call.1} parent=1 // pred_region
      %13 = vsyncadd [#allocation3], 0
      %s15 = sshll.u32 %s0, 4
      %s16 = int_to_ptr.hbm [resolvable:$true] %s15
      %s17 = sshll.u32 [#allocation2], 4
      %s18 = int_to_ptr.vmem [resolvable:$true] %s17
      %20 = dma.hbm_to_vmem [thread:$0]  %s16, 64, %s18, [#allocation3]
    $region5: #{tpu_custom_call.1} parent=1 // pred_fallthru
      _
    // Predicated region
    $region6: #{tpu_custom_call.1} parent=1 // pred_check
      _
    $region7: #{tpu_custom_call.1} parent=1 // pred_check_branch
      %22 = sbr.rel (0) target = $region9
    $region8: #{tpu_custom_call.1} parent=1 // pred_region
      %24 = vsyncadd [#allocation6], 0
      %s26 = sshll.u32 %s1, 4
      %s27 = int_to_ptr.hbm [resolvable:$true] %s26
      %s28 = sshll.u32 [#allocation5], 4
      %s29 = int_to_ptr.vmem [resolvable:$true] %s28
      %31 = dma.hbm_to_vmem [thread:$0]  %s27, 64, %s29, [#allocation6]
    $region9: #{tpu_custom_call.1} parent=1 // pred_fallthru
      _
    // Predicated region
    $region10: #{tpu_custom_call.1} parent=1 // pred_check
      _
    $region11: #{tpu_custom_call.1} parent=1 // pred_check_branch
      %33 = sbr.rel (0) target = $region13
    $region12: #{tpu_custom_call.1} parent=1 // pred_region
      %35 = dma.done [#allocation3], 64
    $region13: #{tpu_custom_call.1} parent=1 // pred_fallthru
      _
    // Predicated region
    $region14: #{tpu_custom_call.1} parent=1 // pred_check
      _
    $region15: #{tpu_custom_call.1} parent=1 // pred_check_branch
      %37 = sbr.rel (0) target = $region17
    $region16: #{tpu_custom_call.1} parent=1 // pred_region
      %39 = dma.done [#allocation6], 64
    $region17: #{tpu_custom_call.1} parent=1 // pred_fallthru
      _
    %v40 = vld [vmem:[#allocation2] sm:$0xf]
    %v41 = vld [vmem:[#allocation5] sm:$0x1]
    %v42 = vld [vmem:[#allocation5 + $0x1] sm:$0x1]
    %v43 = vld [vmem:[#allocation5 + $0x2] sm:$0x1]
    %v44 = vadd.f32 %v40, %v40
    %v45 = vperm.slane %v43, 0
    %v46 = vmul.f32 %v44, %v45
    %v47 = vperm.slane %v42, 0
    %v48 = vadd.f32 %v47, %v46
    %v49 = vmul.f32 %v40, %v48
    %v50 = vperm.slane %v41, 0
    %v51 = vadd.f32 %v50, %v49
    %v52 = vsub.f32 %v51, %v45
    %53 = vst [vmem:[#allocation7] sm:$0xf] %v52
    // Predicated region
    $region18: #{tpu_custom_call.1} parent=1 // pred_check
      _
    $region19: #{tpu_custom_call.1} parent=1 // pred_check_branch
      %55 = sbr.rel (0) target = $region21
    $region20: #{tpu_custom_call.1} parent=1 // pred_region
      %57 = vsyncadd [#allocation4], 0
      %s59 = sshll.u32 [#allocation7], 4
      %s60 = int_to_ptr.vmem [resolvable:$true] %s59
      %s61 = sshll.u32 %s2, 4
      %s62 = int_to_ptr.hbm [resolvable:$true] %s61
      %64 = dma.vmem_to_hbm [thread:$0]  %s60, 64, %s62, [#allocation4]
    $region21: #{tpu_custom_call.1} parent=1 // pred_fallthru
      _
    // Predicated region
    $region22: #{tpu_custom_call.1} parent=1 // pred_check
      _
    $region23: #{tpu_custom_call.1} parent=1 // pred_check_branch
      %66 = sbr.rel (0) target = $region25
    $region24: #{tpu_custom_call.1} parent=1 // pred_region
      %68 = dma.done [#allocation4], 64
    $region25: #{tpu_custom_call.1} parent=1 // pred_fallthru
      _
    %69 = vsyncpa [#allocation3], 1
    %70 = vsyncpa [#allocation6], 1
    %71 = vsyncpa [#allocation4], 1

</llo_original>
